<compile_context>
chip_gen: v7x
topology: tpu7x:2x2x1
jax: 0.10.0
libtpu: 0.0.40
codegen_flags: <defaults>
</compile_context>

<pallas_src>
import functools

import jax
import jax.numpy as jnp
from jax.experimental import pallas as pl
from jax.experimental.pallas import tpu as pltpu

LANE = 128
_N_DIR_PLANES = 9           # pts2l xyz, pts2c xyz, normal xyz
_VMEM_BUDGET = 30 << 20     # double-buffered working-set cap (fits v7x scoped VMEM)


def _make_rpv_kernel(full_outputs):
    def kernel(params_ref, dirs_ref, out_ref):
        eps = jnp.float32(1e-5)
        w = params_ref[0]
        km1 = params_ref[1]          # k - 1
        theta = params_ref[2]
        one_m_t2 = params_ref[3]     # 1 - theta^2
        one_m_rhoc = params_ref[4]   # 1 - rhoc

        f32 = jnp.float32
        lx = dirs_ref[0].astype(f32)
        ly = dirs_ref[1].astype(f32)
        lz = dirs_ref[2].astype(f32)
        vx = dirs_ref[3].astype(f32)
        vy = dirs_ref[4].astype(f32)
        vz = dirs_ref[5].astype(f32)
        nx = dirs_ref[6].astype(f32)
        ny = dirs_ref[7].astype(f32)
        nz = dirs_ref[8].astype(f32)

        # cosines of sun-zenith / view-zenith / phase angle (unit-vector domain)
        ci = jnp.clip(lx * nx + ly * ny + lz * nz, -1.0, 1.0)
        cv = jnp.clip(vx * nx + vy * ny + vz * nz, -1.0, 1.0)
        cg = jnp.clip(lx * vx + ly * vy + lz * vz, -1.0, 1.0)

        si = jnp.sqrt(jnp.maximum(1.0 - ci * ci, 0.0))   # sin(sza)
        sv = jnp.sqrt(jnp.maximum(1.0 - cv * cv, 0.0))   # sin(vza)
        # relative azimuth cosine: cg = ci*cv + si*sv*cos(phi)
        cp = jnp.clip((cg - ci * cv) / (si * sv + eps), -1.0, 1.0)

        # ---- func_M1: (ci*cv*(ci+cv)+eps)^(k-1), NaN -> 0 ----
        tmp = ci * cv * (ci + cv) + eps
        m1 = jnp.exp(km1 * jnp.log(tmp))   # pow; negative base -> NaN (as torch)
        m1 = jnp.where(jnp.isnan(m1), 0.0, m1)

        # ---- Henyey-Greenstein phase function (RPV convention) ----
        denom = 1.0 + theta * theta + 2.0 * theta * cg
        f = one_m_t2 / (denom * jnp.sqrt(denom))

        # ---- func_G: sqrt(tan^2 + tan^2 - 2 tan tan cos(phi) + eps), NaN -> 0 ----
        ti = si / ci          # == tan(acos(ci)) exactly (incl. backfacing sign)
        tv_ = sv / cv
        gtmp = ti * ti + tv_ * tv_ - 2.0 * ti * tv_ * cp + eps
        g_val = jnp.sqrt(gtmp)
        g_val = jnp.where(jnp.isnan(g_val), 0.0, g_val)

        # ---- func_H: 1 + (1 - rhoc) / (1 + G + eps), NaN -> 0 ----
        h = 1.0 + one_m_rhoc / (1.0 + g_val + eps)
        h = jnp.where(jnp.isnan(h), 0.0, h)

        brdf = w * m1 * f * h

        # Direct row-wise stores: each is a full (TM, 128) unmasked slab.
        out_ref[0] = brdf
        if full_outputs:
            out_ref[1] = m1
            out_ref[2] = g_val
            out_ref[3] = h
            out_ref[4] = ci
            out_ref[5] = cv

    return kernel


def _plan(n_points, block_rows, n_out_planes):
    """Choose (TM rows, padded rows Mp, padded points Np, vmem limit bytes)."""
    m = pl.cdiv(n_points, LANE)
    bytes_per_row = (_N_DIR_PLANES + n_out_planes) * LANE * 4 * 2  # double-buffered f32
    max_tm = max(8, (_VMEM_BUDGET // bytes_per_row) // 8 * 8)
    tm = min(block_rows, max_tm, m)
    # Keep >= 2 grid steps on large-enough inputs so both v7x TensorCores get work.
    if tm == m and m >= 16:
        tm = pl.cdiv(m, 2)
    if tm != m:
        tm = pl.cdiv(tm, 8) * 8        # sublane-aligned block when not full-extent
    mp = pl.cdiv(m, tm) * tm
    vmem_limit = max(bytes_per_row * tm + (4 << 20), 16 << 20)
    return tm, mp, mp * LANE, vmem_limit


def pack_directions(pts2l, pts2c, normal, n_padded, dtype=jnp.float32):
    """Pack (N,3) direction triplets into the kernel's (9, n_padded//128, 128)
    component-major layout. One fused copy pass under jit; cache the result and
    pass it via `packed_dirs=` when the geometry is reused across calls."""
    n = pts2l.shape[0]
    dirs = jnp.stack([pts2l, pts2c, normal], axis=0)               # (3, N, 3)
    dirs = jnp.swapaxes(dirs, 1, 2).reshape(_N_DIR_PLANES, n)      # (9, N)
    if n_padded != n:
        dirs = jnp.pad(dirs, ((0, 0), (0, n_padded - n)))
    return dirs.reshape(_N_DIR_PLANES, n_padded // LANE, LANE).astype(dtype)


def rpv_forward(pts2l, pts2c, normal, w, k, theta, rhoc, *,
                block_rows=1024, full_outputs=True,
                input_dtype=jnp.float32, packed_dirs=None):
    """pts2l, pts2c, normal: (N, 3) unit vectors (any N; padded internally).

    full_outputs=True  -> (brdf, M1, G, H, ci, cv) like the PyTorch module.
    full_outputs=False -> brdf only (hot path: 40 B/point instead of 60).
    """
    # TODO(synk): the PyTorch `k/theta/rhoc is None` identity branches (M1/F/G/H
    # replaced by ones) are not specialised here; pass real scalar parameters.
    n = pts2l.shape[0]
    n_out = 6 if full_outputs else 1
    tm, mp, np_, vmem_limit = _plan(n, block_rows, n_out)

    if packed_dirs is None:
        dirs = pack_directions(pts2l, pts2c, normal, np_, dtype=input_dtype)
    else:
        dirs = packed_dirs
        assert dirs.shape == (_N_DIR_PLANES, mp, LANE), (
            dirs.shape, (_N_DIR_PLANES, mp, LANE))

    # Pre-fold scalar-only math once in the wrapper.
    theta_f = jnp.asarray(theta, jnp.float32)
    params = jnp.stack([
        jnp.asarray(w, jnp.float32),
        jnp.asarray(k, jnp.float32) - 1.0,
        theta_f,
        1.0 - theta_f * theta_f,
        1.0 - jnp.asarray(rhoc, jnp.float32),
    ])

    cost = pl.CostEstimate(
        flops=60 * np_,
        transcendentals=8 * np_,
        bytes_accessed=(_N_DIR_PLANES * jnp.dtype(input_dtype).itemsize
                        + n_out * 4) * np_,
    )

    out = pl.pallas_call(
        _make_rpv_kernel(full_outputs),
        out_shape=jax.ShapeDtypeStruct((n_out, mp, LANE), jnp.float32),
        grid=(mp // tm,),
        in_specs=[
            pl.BlockSpec(memory_space=pltpu.MemorySpace.SMEM),         # scalar params
            pl.BlockSpec((_N_DIR_PLANES, tm, LANE), lambda i: (0, i, 0)),
        ],
        out_specs=pl.BlockSpec((n_out, tm, LANE), lambda i: (0, i, 0)),
        compiler_params=pltpu.CompilerParams(
            dimension_semantics=("parallel",),
            vmem_limit_bytes=vmem_limit,
        ),
        cost_estimate=cost,
    )(params, dirs)

    # Per-plane slices fuse with the consumer reshapes; no-ops when Np == N.
    flat = out.reshape(n_out, np_)
    brdf = flat[0, :n].reshape(n, 1)
    if not full_outputs:
        return brdf
    m1 = flat[1, :n].reshape(n, 1)
    g = flat[2, :n].reshape(n, 1)
    h = flat[3, :n].reshape(n, 1)
    ci = flat[4, :n]
    cv = flat[5, :n]
    return brdf, m1, g, h, ci, cv


if __name__ == "__main__":
    key = jax.random.PRNGKey(0)
    N = 256
    k1, k2, k3 = jax.random.split(key, 3)

    def unit_vectors(kk, n):
        v = jax.random.normal(kk, (n, 3), dtype=jnp.float32)
        return v / jnp.linalg.norm(v, axis=-1, keepdims=True)

    pts2l = unit_vectors(k1, N)
    pts2c = unit_vectors(k2, N)
    normal = unit_vectors(k3, N)

    # Deterministic synthetic RPV parameters (scalar w/k/theta/rhoc arguments)
    w, k_param, theta, rhoc = 0.3, 0.7, -0.1, 0.6

    fwd_full = jax.jit(functools.partial(rpv_forward, full_outputs=True))
    fwd_fast = jax.jit(functools.partial(rpv_forward, full_outputs=False))

    brdf, M1, G, H, ci, cv = fwd_full(pts2l, pts2c, normal, w, k_param, theta, rhoc)
    brdf_only = fwd_fast(pts2l, pts2c, normal, w, k_param, theta, rhoc)
    jax.block_until_ready((brdf, M1, G, H, ci, cv, brdf_only))

    assert brdf.shape == (N, 1) and M1.shape == (N, 1)
    assert G.shape == (N, 1) and H.shape == (N, 1)
    assert ci.shape == (N,) and cv.shape == (N,)
    assert brdf_only.shape == (N, 1)
    assert bool(jnp.allclose(brdf, brdf_only))
    print("KERNEL_OK")
</pallas_src>

<mosaic_0001>
module attributes {stable_mosaic.version = 11 : i64} {
  func.func @kernel(%arg0: i32, %arg1: memref<5xf32, #tpu.memory_space<smem>>, %arg2: memref<9x2x128xf32, #tpu.memory_space<vmem>>, %arg3: memref<6x2x128xf32, #tpu.memory_space<vmem>>) attributes {dimension_semantics = [#tpu.dimension_semantics<parallel>], iteration_bounds = array<i64: 1>, scalar_prefetch = 0 : i64, scratch_operands = 0 : i64, tpu.core_type = #tpu.core_type<tc>, window_params = [{transform_indices = @transform_0, window_bounds = array<i64: 5>}, {transform_indices = @transform_1, window_bounds = array<i64: 9, 2, 128>}, {transform_indices = @transform_2, window_bounds = array<i64: 6, 2, 128>}]} {
    %c0 = arith.constant 0 : index
    %0 = memref.load %arg1[%c0] : memref<5xf32, #tpu.memory_space<smem>>
    %c1 = arith.constant 1 : index
    %1 = memref.load %arg1[%c1] : memref<5xf32, #tpu.memory_space<smem>>
    %c2 = arith.constant 2 : index
    %2 = memref.load %arg1[%c2] : memref<5xf32, #tpu.memory_space<smem>>
    %c3 = arith.constant 3 : index
    %3 = memref.load %arg1[%c3] : memref<5xf32, #tpu.memory_space<smem>>
    %c4 = arith.constant 4 : index
    %4 = memref.load %arg1[%c4] : memref<5xf32, #tpu.memory_space<smem>>
    %c0_0 = arith.constant 0 : index
    %c0_1 = arith.constant 0 : index
    %c0_2 = arith.constant 0 : index
    %5 = vector.load %arg2[%c0_0, %c0_1, %c0_2] : memref<9x2x128xf32, #tpu.memory_space<vmem>>, vector<1x2x128xf32>
    %6 = vector.shape_cast %5 : vector<1x2x128xf32> to vector<2x128xf32>
    %c1_3 = arith.constant 1 : index
    %c0_4 = arith.constant 0 : index
    %c0_5 = arith.constant 0 : index
    %7 = vector.load %arg2[%c1_3, %c0_4, %c0_5] : memref<9x2x128xf32, #tpu.memory_space<vmem>>, vector<1x2x128xf32>
    %8 = vector.shape_cast %7 : vector<1x2x128xf32> to vector<2x128xf32>
    %c2_6 = arith.constant 2 : index
    %c0_7 = arith.constant 0 : index
    %c0_8 = arith.constant 0 : index
    %9 = vector.load %arg2[%c2_6, %c0_7, %c0_8] : memref<9x2x128xf32, #tpu.memory_space<vmem>>, vector<1x2x128xf32>
    %10 = vector.shape_cast %9 : vector<1x2x128xf32> to vector<2x128xf32>
    %c3_9 = arith.constant 3 : index
    %c0_10 = arith.constant 0 : index
    %c0_11 = arith.constant 0 : index
    %11 = vector.load %arg2[%c3_9, %c0_10, %c0_11] : memref<9x2x128xf32, #tpu.memory_space<vmem>>, vector<1x2x128xf32>
    %12 = vector.shape_cast %11 : vector<1x2x128xf32> to vector<2x128xf32>
    %c4_12 = arith.constant 4 : index
    %c0_13 = arith.constant 0 : index
    %c0_14 = arith.constant 0 : index
    %13 = vector.load %arg2[%c4_12, %c0_13, %c0_14] : memref<9x2x128xf32, #tpu.memory_space<vmem>>, vector<1x2x128xf32>
    %14 = vector.shape_cast %13 : vector<1x2x128xf32> to vector<2x128xf32>
    %c5 = arith.constant 5 : index
    %c0_15 = arith.constant 0 : index
    %c0_16 = arith.constant 0 : index
    %15 = vector.load %arg2[%c5, %c0_15, %c0_16] : memref<9x2x128xf32, #tpu.memory_space<vmem>>, vector<1x2x128xf32>
    %16 = vector.shape_cast %15 : vector<1x2x128xf32> to vector<2x128xf32>
    %c6 = arith.constant 6 : index
    %c0_17 = arith.constant 0 : index
    %c0_18 = arith.constant 0 : index
    %17 = vector.load %arg2[%c6, %c0_17, %c0_18] : memref<9x2x128xf32, #tpu.memory_space<vmem>>, vector<1x2x128xf32>
    %18 = vector.shape_cast %17 : vector<1x2x128xf32> to vector<2x128xf32>
    %c7 = arith.constant 7 : index
    %c0_19 = arith.constant 0 : index
    %c0_20 = arith.constant 0 : index
    %19 = vector.load %arg2[%c7, %c0_19, %c0_20] : memref<9x2x128xf32, #tpu.memory_space<vmem>>, vector<1x2x128xf32>
    %20 = vector.shape_cast %19 : vector<1x2x128xf32> to vector<2x128xf32>
    %c8 = arith.constant 8 : index
    %c0_21 = arith.constant 0 : index
    %c0_22 = arith.constant 0 : index
    %21 = vector.load %arg2[%c8, %c0_21, %c0_22] : memref<9x2x128xf32, #tpu.memory_space<vmem>>, vector<1x2x128xf32>
    %22 = vector.shape_cast %21 : vector<1x2x128xf32> to vector<2x128xf32>
    %23 = arith.mulf %6, %18 : vector<2x128xf32>
    %24 = arith.mulf %8, %20 : vector<2x128xf32>
    %25 = arith.addf %23, %24 : vector<2x128xf32>
    %26 = arith.mulf %10, %22 : vector<2x128xf32>
    %27 = arith.addf %25, %26 : vector<2x128xf32>
    %cst = arith.constant -1.000000e+00 : f32
    %cst_23 = arith.constant 1.000000e+00 : f32
    %28 = vector.broadcast %cst : f32 to vector<2x128xf32>
    %29 = arith.maximumf %28, %27 : vector<2x128xf32>
    %30 = vector.broadcast %cst_23 : f32 to vector<2x128xf32>
    %31 = arith.minimumf %30, %29 : vector<2x128xf32>
    %32 = arith.mulf %12, %18 : vector<2x128xf32>
    %33 = arith.mulf %14, %20 : vector<2x128xf32>
    %34 = arith.addf %32, %33 : vector<2x128xf32>
    %35 = arith.mulf %16, %22 : vector<2x128xf32>
    %36 = arith.addf %34, %35 : vector<2x128xf32>
    %cst_24 = arith.constant -1.000000e+00 : f32
    %cst_25 = arith.constant 1.000000e+00 : f32
    %37 = vector.broadcast %cst_24 : f32 to vector<2x128xf32>
    %38 = arith.maximumf %37, %36 : vector<2x128xf32>
    %39 = vector.broadcast %cst_25 : f32 to vector<2x128xf32>
    %40 = arith.minimumf %39, %38 : vector<2x128xf32>
    %41 = arith.mulf %6, %12 : vector<2x128xf32>
    %42 = arith.mulf %8, %14 : vector<2x128xf32>
    %43 = arith.addf %41, %42 : vector<2x128xf32>
    %44 = arith.mulf %10, %16 : vector<2x128xf32>
    %45 = arith.addf %43, %44 : vector<2x128xf32>
    %cst_26 = arith.constant -1.000000e+00 : f32
    %cst_27 = arith.constant 1.000000e+00 : f32
    %46 = vector.broadcast %cst_26 : f32 to vector<2x128xf32>
    %47 = arith.maximumf %46, %45 : vector<2x128xf32>
    %48 = vector.broadcast %cst_27 : f32 to vector<2x128xf32>
    %49 = arith.minimumf %48, %47 : vector<2x128xf32>
    %50 = arith.mulf %31, %31 : vector<2x128xf32>
    %cst_28 = arith.constant 1.000000e+00 : f32
    %51 = vector.broadcast %cst_28 : f32 to vector<2x128xf32>
    %52 = arith.subf %51, %50 : vector<2x128xf32>
    %cst_29 = arith.constant 0.000000e+00 : f32
    %53 = vector.broadcast %cst_29 : f32 to vector<2x128xf32>
    %54 = arith.maximumf %52, %53 : vector<2x128xf32>
    %55 = math.sqrt %54 : vector<2x128xf32>
    %56 = arith.mulf %40, %40 : vector<2x128xf32>
    %cst_30 = arith.constant 1.000000e+00 : f32
    %57 = vector.broadcast %cst_30 : f32 to vector<2x128xf32>
    %58 = arith.subf %57, %56 : vector<2x128xf32>
    %cst_31 = arith.constant 0.000000e+00 : f32
    %59 = vector.broadcast %cst_31 : f32 to vector<2x128xf32>
    %60 = arith.maximumf %58, %59 : vector<2x128xf32>
    %61 = math.sqrt %60 : vector<2x128xf32>
    %62 = arith.mulf %31, %40 : vector<2x128xf32>
    %63 = arith.subf %49, %62 : vector<2x128xf32>
    %64 = arith.mulf %55, %61 : vector<2x128xf32>
    %cst_32 = arith.constant 9.99999974E-6 : f32
    %65 = vector.broadcast %cst_32 : f32 to vector<2x128xf32>
    %66 = arith.addf %64, %65 : vector<2x128xf32>
    %67 = arith.divf %63, %66 : vector<2x128xf32>
    %cst_33 = arith.constant -1.000000e+00 : f32
    %cst_34 = arith.constant 1.000000e+00 : f32
    %68 = vector.broadcast %cst_33 : f32 to vector<2x128xf32>
    %69 = arith.maximumf %68, %67 : vector<2x128xf32>
    %70 = vector.broadcast %cst_34 : f32 to vector<2x128xf32>
    %71 = arith.minimumf %70, %69 : vector<2x128xf32>
    %72 = arith.mulf %31, %40 : vector<2x128xf32>
    %73 = arith.addf %31, %40 : vector<2x128xf32>
    %74 = arith.mulf %72, %73 : vector<2x128xf32>
    %cst_35 = arith.constant 9.99999974E-6 : f32
    %75 = vector.broadcast %cst_35 : f32 to vector<2x128xf32>
    %76 = arith.addf %74, %75 : vector<2x128xf32>
    %77 = math.log %76 : vector<2x128xf32>
    %78 = vector.broadcast %1 : f32 to vector<2x128xf32>
    %79 = arith.mulf %78, %77 : vector<2x128xf32>
    %80 = math.exp %79 : vector<2x128xf32>
    %81 = arith.cmpf one, %80, %80 : vector<2x128xf32>
    %cst_36 = arith.constant 0.000000e+00 : f32
    %82 = vector.broadcast %cst_36 : f32 to vector<2x128xf32>
    %83 = arith.select %81, %82, %80 : vector<2x128xi1>, vector<2x128xf32>
    %84 = arith.mulf %2, %2 : f32
    %cst_37 = arith.constant 1.000000e+00 : f32
    %85 = arith.addf %cst_37, %84 : f32
    %cst_38 = arith.constant 2.000000e+00 : f32
    %86 = arith.mulf %cst_38, %2 : f32
    %87 = vector.broadcast %86 : f32 to vector<2x128xf32>
    %88 = arith.mulf %87, %49 : vector<2x128xf32>
    %89 = vector.broadcast %85 : f32 to vector<2x128xf32>
    %90 = arith.addf %89, %88 : vector<2x128xf32>
    %91 = math.sqrt %90 : vector<2x128xf32>
    %92 = arith.mulf %90, %91 : vector<2x128xf32>
    %93 = vector.broadcast %3 : f32 to vector<2x128xf32>
    %94 = arith.divf %93, %92 : vector<2x128xf32>
    %95 = arith.divf %55, %31 : vector<2x128xf32>
    %96 = arith.divf %61, %40 : vector<2x128xf32>
    %97 = arith.mulf %95, %95 : vector<2x128xf32>
    %98 = arith.mulf %96, %96 : vector<2x128xf32>
    %99 = arith.addf %97, %98 : vector<2x128xf32>
    %cst_39 = arith.constant 2.000000e+00 : f32
    %100 = vector.broadcast %cst_39 : f32 to vector<2x128xf32>
    %101 = arith.mulf %100, %95 : vector<2x128xf32>
    %102 = arith.mulf %101, %96 : vector<2x128xf32>
    %103 = arith.mulf %102, %71 : vector<2x128xf32>
    %104 = arith.subf %99, %103 : vector<2x128xf32>
    %cst_40 = arith.constant 9.99999974E-6 : f32
    %105 = vector.broadcast %cst_40 : f32 to vector<2x128xf32>
    %106 = arith.addf %104, %105 : vector<2x128xf32>
    %107 = math.sqrt %106 : vector<2x128xf32>
    %108 = arith.cmpf one, %107, %107 : vector<2x128xf32>
    %cst_41 = arith.constant 0.000000e+00 : f32
    %109 = vector.broadcast %cst_41 : f32 to vector<2x128xf32>
    %110 = arith.select %108, %109, %107 : vector<2x128xi1>, vector<2x128xf32>
    %cst_42 = arith.constant 1.000000e+00 : f32
    %111 = vector.broadcast %cst_42 : f32 to vector<2x128xf32>
    %112 = arith.addf %111, %110 : vector<2x128xf32>
    %cst_43 = arith.constant 9.99999974E-6 : f32
    %113 = vector.broadcast %cst_43 : f32 to vector<2x128xf32>
    %114 = arith.addf %112, %113 : vector<2x128xf32>
    %115 = vector.broadcast %4 : f32 to vector<2x128xf32>
    %116 = arith.divf %115, %114 : vector<2x128xf32>
    %cst_44 = arith.constant 1.000000e+00 : f32
    %117 = vector.broadcast %cst_44 : f32 to vector<2x128xf32>
    %118 = arith.addf %117, %116 : vector<2x128xf32>
    %119 = arith.cmpf one, %118, %118 : vector<2x128xf32>
    %cst_45 = arith.constant 0.000000e+00 : f32
    %120 = vector.broadcast %cst_45 : f32 to vector<2x128xf32>
    %121 = arith.select %119, %120, %118 : vector<2x128xi1>, vector<2x128xf32>
    %122 = vector.broadcast %0 : f32 to vector<2x128xf32>
    %123 = arith.mulf %122, %83 : vector<2x128xf32>
    %124 = arith.mulf %123, %94 : vector<2x128xf32>
    %125 = arith.mulf %124, %121 : vector<2x128xf32>
    %c0_46 = arith.constant 0 : index
    %c0_47 = arith.constant 0 : index
    %c0_48 = arith.constant 0 : index
    %126 = vector.load %arg3[%c0_46, %c0_47, %c0_48] : memref<6x2x128xf32, #tpu.memory_space<vmem>>, vector<1x2x128xf32>
    %127 = vector.shape_cast %126 : vector<1x2x128xf32> to vector<2x128xf32>
    %128 = vector.shape_cast %125 : vector<2x128xf32> to vector<1x2x128xf32>
    tpu.vector_store %arg3[%c0_46, %c0_47, %c0_48], %128 {strides = array<i32>} : memref<6x2x128xf32, #tpu.memory_space<vmem>>, vector<1x2x128xf32>,
    %c1_49 = arith.constant 1 : index
    %c0_50 = arith.constant 0 : index
    %c0_51 = arith.constant 0 : index
    %129 = vector.load %arg3[%c1_49, %c0_50, %c0_51] : memref<6x2x128xf32, #tpu.memory_space<vmem>>, vector<1x2x128xf32>
    %130 = vector.shape_cast %129 : vector<1x2x128xf32> to vector<2x128xf32>
    %131 = vector.shape_cast %83 : vector<2x128xf32> to vector<1x2x128xf32>
    tpu.vector_store %arg3[%c1_49, %c0_50, %c0_51], %131 {strides = array<i32>} : memref<6x2x128xf32, #tpu.memory_space<vmem>>, vector<1x2x128xf32>,
    %c2_52 = arith.constant 2 : index
    %c0_53 = arith.constant 0 : index
    %c0_54 = arith.constant 0 : index
    %132 = vector.load %arg3[%c2_52, %c0_53, %c0_54] : memref<6x2x128xf32, #tpu.memory_space<vmem>>, vector<1x2x128xf32>
    %133 = vector.shape_cast %132 : vector<1x2x128xf32> to vector<2x128xf32>
    %134 = vector.shape_cast %110 : vector<2x128xf32> to vector<1x2x128xf32>
    tpu.vector_store %arg3[%c2_52, %c0_53, %c0_54], %134 {strides = array<i32>} : memref<6x2x128xf32, #tpu.memory_space<vmem>>, vector<1x2x128xf32>,
    %c3_55 = arith.constant 3 : index
    %c0_56 = arith.constant 0 : index
    %c0_57 = arith.constant 0 : index
    %135 = vector.load %arg3[%c3_55, %c0_56, %c0_57] : memref<6x2x128xf32, #tpu.memory_space<vmem>>, vector<1x2x128xf32>
    %136 = vector.shape_cast %135 : vector<1x2x128xf32> to vector<2x128xf32>
    %137 = vector.shape_cast %121 : vector<2x128xf32> to vector<1x2x128xf32>
    tpu.vector_store %arg3[%c3_55, %c0_56, %c0_57], %137 {strides = array<i32>} : memref<6x2x128xf32, #tpu.memory_space<vmem>>, vector<1x2x128xf32>,
    %c4_58 = arith.constant 4 : index
    %c0_59 = arith.constant 0 : index
    %c0_60 = arith.constant 0 : index
    %138 = vector.load %arg3[%c4_58, %c0_59, %c0_60] : memref<6x2x128xf32, #tpu.memory_space<vmem>>, vector<1x2x128xf32>
    %139 = vector.shape_cast %138 : vector<1x2x128xf32> to vector<2x128xf32>
    %140 = vector.shape_cast %31 : vector<2x128xf32> to vector<1x2x128xf32>
    tpu.vector_store %arg3[%c4_58, %c0_59, %c0_60], %140 {strides = array<i32>} : memref<6x2x128xf32, #tpu.memory_space<vmem>>, vector<1x2x128xf32>,
    %c5_61 = arith.constant 5 : index
    %c0_62 = arith.constant 0 : index
    %c0_63 = arith.constant 0 : index
    %141 = vector.load %arg3[%c5_61, %c0_62, %c0_63] : memref<6x2x128xf32, #tpu.memory_space<vmem>>, vector<1x2x128xf32>
    %142 = vector.shape_cast %141 : vector<1x2x128xf32> to vector<2x128xf32>
    %143 = vector.shape_cast %40 : vector<2x128xf32> to vector<1x2x128xf32>
    tpu.vector_store %arg3[%c5_61, %c0_62, %c0_63], %143 {strides = array<i32>} : memref<6x2x128xf32, #tpu.memory_space<vmem>>, vector<1x2x128xf32>,
    return
  }
  func.func @transform_0(%arg0: i32) -> i32 {
    %c0_i32 = arith.constant 0 : i32
    %c0_i32_0 = arith.constant 0 : i32
    return %c0_i32 : i32
  }
  func.func @transform_1(%arg0: i32) -> (i32, i32, i32) {
    %c0_i32 = arith.constant 0 : i32
    %c0_i32_0 = arith.constant 0 : i32
    %c0_i32_1 = arith.constant 0 : i32
    return %c0_i32, %arg0, %c0_i32_0 : i32, i32, i32
  }
  func.func @transform_2(%arg0: i32) -> (i32, i32, i32) {
    %c0_i32 = arith.constant 0 : i32
    %c0_i32_0 = arith.constant 0 : i32
    %c0_i32_1 = arith.constant 0 : i32
    return %c0_i32, %arg0, %c0_i32_0 : i32, i32, i32
  }
}

</mosaic_0001>

<llo_original>
// kernel: rpv_forward.1
$region0: #{rpv_forward.1}
  #allocation0 [shape = 'u32[]', space=smem, size = 0x4, offset = 0x4, fixed_abs, tag = 'smem constant byte address 0x4 - core index']
  #allocation1 [shape = 'u32[144,128]{1,0:T(1,128)}', space=vmem, size = 0x12000, scoped, tag = 'internal scratch']
  %s0 = inlined_call_operand.vmem [shape: f32[5], index: 0, kind: input, shape index: {}]
  %s1 = inlined_call_operand.vmem [shape: f32[9,2,128], index: 1, kind: input, shape index: {}]
  %s2 = inlined_call_operand.vmem [shape: f32[6,2,128], index: 2, kind: output, shape index: {}]
  %s3 = sld [smem:[#allocation0]]
  $region22: #{rpv_forward.1} parent=0
    _
  %s5 = ssub.s32 1, %s3
  %s6 = scalar_select 0, %s5, %s3
  $region1: #{rpv_forward.1} parent=0
    #allocation2 [shape = 'u8[512]{0}', space=smem, size = 0x200, scoped, tag = 'input window, operand 0, single buffered']
    #allocation3 [shape = 's32[1]{0}', space=sflag, size = 0x4, scoped, tag = 'scoped memory for rpv_forward.1']
    %7 = vsyncpa [#allocation3], 0
    // Predicated region
    $region2: #{rpv_forward.1} parent=1 // pred_check
      _
    $region3: #{rpv_forward.1} parent=1 // pred_check_branch
      %9 = sbr.rel (0) target = $region5
    $region4: #{rpv_forward.1} parent=1 // pred_region
      %s11 = ssub.s32 16, 16
      %12 = vsyncadd [#allocation3], %s11
      %s14 = sshll.u32 %s0, 4
      %s15 = int_to_ptr.vmem [resolvable:$true] %s14
      %17 = dma.vmem_to_smem %s15, 16, [#allocation2], [#allocation3]
    $region5: #{rpv_forward.1} parent=1 // pred_fallthru
      _
    // Predicated region
    $region6: #{rpv_forward.1} parent=1 // pred_check
      _
    $region7: #{rpv_forward.1} parent=1 // pred_check_branch
      %19 = sbr.rel (0) target = $region9
    $region8: #{rpv_forward.1} parent=1 // pred_region
      _
    $region9: #{rpv_forward.1} parent=1 // pred_fallthru
      _
    // Predicated region
    $region10: #{rpv_forward.1} parent=1 // pred_check
      _
    $region11: #{rpv_forward.1} parent=1 // pred_check_branch
      %21 = sbr.rel (0) target = $region13
    $region12: #{rpv_forward.1} parent=1 // pred_region
      %22 = dma.done [#allocation3], 16
    $region13: #{rpv_forward.1} parent=1 // pred_fallthru
      _
    %23 = sfence
    %s24 = sld [smem:[#allocation2]]
    %s25 = sld [smem:[#allocation2 + $0x1]]
    %s26 = sld [smem:[#allocation2 + $0x2]]
    %s27 = sld [smem:[#allocation2 + $0x3]]
    %s28 = sld [smem:[#allocation2 + $0x4]]
    %v29 = vld [vmem:[%s1] sm:$0x3]
    %s30 = scalar_lea.vmem %s1, 2
    %v31 = vld [vmem:[%s30] sm:$0x3]
    %s32 = scalar_lea.vmem %s1, 4
    %v33 = vld [vmem:[%s32] sm:$0x3]
    %s34 = scalar_lea.vmem %s1, 6
    %v35 = vld [vmem:[%s34] sm:$0x3]
    %s36 = scalar_lea.vmem %s1, 8
    %v37 = vld [vmem:[%s36] sm:$0x3]
    %s38 = scalar_lea.vmem %s1, 10
    %v39 = vld [vmem:[%s38] sm:$0x3]
    %s40 = scalar_lea.vmem %s1, 12
    %v41 = vld [vmem:[%s40] sm:$0x3]
    %s42 = scalar_lea.vmem %s1, 14
    %v43 = vld [vmem:[%s42] sm:$0x3]
    %s44 = scalar_lea.vmem %s1, 16
    %v45 = vld [vmem:[%s44] sm:$0x3]
    %v46 = vmul.f32 %v29, %v41
    %v47 = vmul.f32 %v31, %v43
    %v48 = vadd.f32 %v46, %v47
    %v49 = vmul.f32 %v33, %v45
    %v50 = vadd.f32 %v48, %v49
    %v51 = vmax.f32 %v50, -1.0
    %v52 = vmin.f32 %v51, 1.0
    %v53 = vmul.f32 %v35, %v41
    %v54 = vmul.f32 %v37, %v43
    %v55 = vadd.f32 %v53, %v54
    %v56 = vmul.f32 %v39, %v45
    %v57 = vadd.f32 %v55, %v56
    %v58 = vmax.f32 %v57, -1.0
    %v59 = vmin.f32 %v58, 1.0
    %v60 = vmul.f32 %v29, %v35
    %v61 = vmul.f32 %v31, %v37
    %v62 = vadd.f32 %v60, %v61
    %v63 = vmul.f32 %v33, %v39
    %v64 = vadd.f32 %v62, %v63
    %v65 = vmax.f32 %v64, -1.0
    %v66 = vmin.f32 %v65, 1.0
    %v67 = vmul.f32 %v52, %v52
    %v68 = vsub.f32 1.0, %v67
    %v69 = vmax.f32 %v68, 0.0
    %v70 = vrsqrt.pop %v69
    %v71 = vmul.f32 %v69, %v70
    %vm72 = vcmp.eq.f32.partialorder %v69, inf
    %v73 = vsel %vm72, %v69, %v71
    %vm74 = vcmp.eq.f32.partialorder %v69, 0.0
    %v75 = vand.u32 %v69, 2147483648
    %v76 = vsel %vm74, %v75, %v73
    %v77 = vmul.f32 %v59, %v59
    %v78 = vsub.f32 1.0, %v77
    %v79 = vmax.f32 %v78, 0.0
    %v80 = vrsqrt.pop %v79
    %v81 = vmul.f32 %v79, %v80
    %vm82 = vcmp.eq.f32.partialorder %v79, inf
    %v83 = vsel %vm82, %v79, %v81
    %vm84 = vcmp.eq.f32.partialorder %v79, 0.0
    %v85 = vand.u32 %v79, 2147483648
    %v86 = vsel %vm84, %v85, %v83
    %v87 = vmul.f32 %v52, %v59
    %v88 = vsub.f32 %v66, %v87
    %v89 = vmul.f32 %v76, %v86
    %v90 = vadd.f32 %v89, 1e-05
    %v91 = vrcp.pop %v90
    %v92 = vmul.f32 %v88, %v91
    %v93 = vmax.f32 %v92, -1.0
    %v94 = vmin.f32 %v93, 1.0
    %v95 = vadd.f32 %v52, %v59
    %v96 = vmul.f32 %v87, %v95
    %v97 = vadd.f32 %v96, 1e-05
    %v98 = vlog2.pop %v97
    %v99 = vmul.f32 %v98, 0.6931472
    %v100 = vstv %s25
    %v101 = vmul.f32 %v100, %v99
    %v102 = vmul.f32 %v101, 1.442695
    %v103 = vpow.pop %v102
    %vm104 = vcmp.ne.f32.partialorder %v103, %v103
    %v105 = vsel %vm104, 0.0, %v103
    %s106 = smul.f32 %s26, %s26
    %s107 = sadd.f32 %s106, 1.0
    %s108 = smul.f32 %s26, 2.0
    %v109 = vstv %s108
    %v110 = vmul.f32 %v109, %v66
    %v111 = vstv %s107
    %v112 = vadd.f32 %v111, %v110
    %v113 = vrsqrt.pop %v112
    %v114 = vmul.f32 %v112, %v113
    %vm115 = vcmp.eq.f32.partialorder %v112, inf
    %v116 = vsel %vm115, %v112, %v114
    %vm117 = vcmp.eq.f32.partialorder %v112, 0.0
    %v118 = vand.u32 %v112, 2147483648
    %v119 = vsel %vm117, %v118, %v116
    %v120 = vmul.f32 %v112, %v119
    %v121 = vstv %s27
    %v122 = vrcp.pop %v120
    %v123 = vmul.f32 %v121, %v122
    %v124 = vrcp.pop %v52
    %v125 = vmul.f32 %v76, %v124
    %v126 = vrcp.pop %v59
    %v127 = vmul.f32 %v86, %v126
    %v128 = vmul.f32 %v125, %v125
    %v129 = vmul.f32 %v127, %v127
    %v130 = vadd.f32 %v128, %v129
    %v131 = vmul.f32 %v125, 2.0
    %v132 = vmul.f32 %v131, %v127
    %v133 = vmul.f32 %v132, %v94
    %v134 = vsub.f32 %v130, %v133
    %v135 = vadd.f32 %v134, 1e-05
    %v136 = vrsqrt.pop %v135
    %v137 = vmul.f32 %v135, %v136
    %vm138 = vcmp.eq.f32.partialorder %v135, inf
    %v139 = vsel %vm138, %v135, %v137
    %vm140 = vcmp.eq.f32.partialorder %v135, 0.0
    %v141 = vand.u32 %v135, 2147483648
    %v142 = vsel %vm140, %v141, %v139
    %vm143 = vcmp.ne.f32.partialorder %v142, %v142
    %v144 = vsel %vm143, 0.0, %v142
    %v145 = vadd.f32 %v144, 1.0
    %v146 = vadd.f32 %v145, 1e-05
    %v147 = vstv %s28
    %v148 = vrcp.pop %v146
    %v149 = vmul.f32 %v147, %v148
    %v150 = vadd.f32 %v149, 1.0
    %vm151 = vcmp.ne.f32.partialorder %v150, %v150
    %v152 = vsel %vm151, 0.0, %v150
    %v153 = vstv %s24
    %v154 = vmul.f32 %v153, %v105
    %v155 = vmul.f32 %v154, %v123
    %v156 = vmul.f32 %v155, %v152
    %157 = vst [vmem:[%s2] sm:$0x3] %v156
    %s158 = scalar_lea.vmem %s2, 2
    %159 = vst [vmem:[%s158] sm:$0x3] %v105
    %s160 = scalar_lea.vmem %s2, 4
    %161 = vst [vmem:[%s160] sm:$0x3] %v144
    %s162 = scalar_lea.vmem %s2, 6
    %163 = vst [vmem:[%s162] sm:$0x3] %v152
    %s164 = scalar_lea.vmem %s2, 8
    %165 = vst [vmem:[%s164] sm:$0x3] %v52
    %s166 = scalar_lea.vmem %s2, 10
    %167 = vst [vmem:[%s166] sm:$0x3] %v59
    // Predicated region
    $region14: #{rpv_forward.1} parent=1 // pred_check
      _
    $region15: #{rpv_forward.1} parent=1 // pred_check_branch
      %169 = sbr.rel (0) target = $region17
    $region16: #{rpv_forward.1} parent=1 // pred_region
      _
    $region17: #{rpv_forward.1} parent=1 // pred_fallthru
      _
    // Predicated region
    $region18: #{rpv_forward.1} parent=1 // pred_check
      _
    $region19: #{rpv_forward.1} parent=1 // pred_check_branch
      %171 = sbr.rel (0) target = $region21
    $region20: #{rpv_forward.1} parent=1 // pred_region
      _
    $region21: #{rpv_forward.1} parent=1 // pred_fallthru
      _
    %172 = vsyncpa [#allocation3], 1

</llo_original>
